<compile_context>
chip_gen: v7x
topology: tpu7x:2x2x1
jax: 0.10.0
libtpu: 0.0.40
codegen_flags: <defaults>
</compile_context>

<pallas_src>
import functools

import jax
import jax.numpy as jnp
from jax import lax
from jax.experimental import pallas as pl
from jax.experimental.pallas import tpu as pltpu

# Module hyperparameters (the PyTorch module references globals emb_size / hidden_size).
EMB_SIZE = 32
HIDDEN_SIZE = 64
OUT_SIZE = 16

_MAX_BLOCK_B = 4096  # ~0.5 MiB f32 x-tile; safe on v5e/v6e/v7x scoped-VMEM defaults.


def _action_head_kernel(x_ref, w1_ref, b1_ref, w2_ref, b2_ref, o_ref):
    # x_ref:  (block_b, EMB)   w1_ref: (EMB, HID)   b1_ref: (1, HID)
    # w2_ref: (HID, OUT)       b2_ref: (1, OUT)     o_ref:  (block_b, OUT)
    x = x_ref[...]  # native dtype -> MXU at full rate (bf16 stays bf16)

    # fc_1: accumulate in f32 on the MXU.
    h = jnp.dot(x, w1_ref[...], preferred_element_type=jnp.float32)
    h = h + b1_ref[...].astype(jnp.float32)

    # nn.GELU() default = exact (erf-based) GELU, computed in f32.
    inv_sqrt2 = jnp.float32(0.7071067811865476)
    h = jnp.float32(0.5) * h * (jnp.float32(1.0) + lax.erf(h * inv_sqrt2))

    # fc_2: feed the activation to the MXU in the weight dtype (bf16 if weights are bf16).
    out = jnp.dot(h.astype(w2_ref.dtype), w2_ref[...],
                  preferred_element_type=jnp.float32)
    out = out + b2_ref[...].astype(jnp.float32)

    o_ref[...] = out.astype(o_ref.dtype)


def prepare_action_head_params(w1, b1, w2, b2):
    """One-time param prep (hoisted out of the hot path).

    w1: [hidden, emb], b1: [hidden], w2: [out, hidden], b2: [out]  (PyTorch layout)
    Returns (w1t [emb,hidden], b1r [1,hidden], w2t [hidden,out], b2r [1,out]).
    """
    w1 = jnp.asarray(w1)
    w2 = jnp.asarray(w2)
    return (w1.T, jnp.asarray(b1).reshape(1, -1),
            w2.T, jnp.asarray(b2).reshape(1, -1))


def _auto_block_b(B):
    """Large batch tiles (mem-bound roofline), >= 8 grid steps for huge B (v7x)."""
    if B <= _MAX_BLOCK_B:
        return B                       # single full-extent block (any B allowed)
    blk = min(_MAX_BLOCK_B, pl.cdiv(B, 8))
    return max(8, (blk // 8) * 8)      # multiple of 8 (f32 sublanes)


@functools.partial(jax.jit, static_argnames=("block_b",))
def action_head_forward(x, w1t, b1r, w2t, b2r, *, block_b=None):
    """x: [B, emb]; params pre-transposed via prepare_action_head_params()."""
    B, E = x.shape
    H = w1t.shape[1]
    O = w2t.shape[1]

    if block_b is None:
        block_b = _auto_block_b(B)

    grid = (pl.cdiv(B, block_b),)

    return pl.pallas_call(
        _action_head_kernel,
        out_shape=jax.ShapeDtypeStruct((B, O), x.dtype),
        grid_spec=pltpu.PrefetchScalarGridSpec(
            num_scalar_prefetch=0,
            grid=grid,
            in_specs=[
                pl.BlockSpec((block_b, E), lambda i: (i, 0)),  # x tile over batch
                pl.BlockSpec((E, H), lambda i: (0, 0)),        # W1^T (resident)
                pl.BlockSpec((1, H), lambda i: (0, 0)),        # b1
                pl.BlockSpec((H, O), lambda i: (0, 0)),        # W2^T (resident)
                pl.BlockSpec((1, O), lambda i: (0, 0)),        # b2
            ],
            out_specs=pl.BlockSpec((block_b, O), lambda i: (i, 0)),
        ),
        compiler_params=pltpu.CompilerParams(
            dimension_semantics=("parallel",),
        ),
    )(x, w1t, b1r, w2t, b2r)


def _reference(x, w1, b1, w2, b2):
    h = x @ w1.T + b1
    h = jax.nn.gelu(h, approximate=False)
    return h @ w2.T + b2


if __name__ == "__main__":
    key = jax.random.PRNGKey(0)
    kx, k1, k2, k3, k4, kx2 = jax.random.split(key, 6)

    # Deterministic synthetic parameters (PyTorch-Linear-like uniform init).
    bound1 = 1.0 / (EMB_SIZE ** 0.5)
    w1 = jax.random.uniform(k1, (HIDDEN_SIZE, EMB_SIZE), jnp.float32, -bound1, bound1)
    b1 = jax.random.uniform(k2, (HIDDEN_SIZE,), jnp.float32, -bound1, bound1)
    bound2 = 1.0 / (HIDDEN_SIZE ** 0.5)
    w2 = jax.random.uniform(k3, (OUT_SIZE, HIDDEN_SIZE), jnp.float32, -bound2, bound2)
    b2 = jax.random.uniform(k4, (OUT_SIZE,), jnp.float32, -bound2, bound2)

    # One-time param preparation (hoisted out of the per-call hot path).
    w1t, b1r, w2t, b2r = prepare_action_head_params(w1, b1, w2, b2)

    # --- Test 1: small batch, single full-extent block ---
    B = 8
    x = jax.random.normal(kx, (B, EMB_SIZE), dtype=jnp.float32)
    out = jax.block_until_ready(action_head_forward(x, w1t, b1r, w2t, b2r))
    ref = _reference(x, w1, b1, w2, b2)
    assert out.shape == (B, OUT_SIZE)
    assert jnp.allclose(out, ref, atol=1e-5, rtol=1e-5), "mismatch vs reference (B=8)"

    # --- Test 2: ragged batch with multi-step grid (exercises tail-block masking) ---
    B2 = 200
    x2 = jax.random.normal(kx2, (B2, EMB_SIZE), dtype=jnp.float32)
    out2 = jax.block_until_ready(
        action_head_forward(x2, w1t, b1r, w2t, b2r, block_b=64))
    ref2 = _reference(x2, w1, b1, w2, b2)
    assert out2.shape == (B2, OUT_SIZE)
    assert jnp.allclose(out2, ref2, atol=1e-5, rtol=1e-5), "mismatch vs reference (B=200)"

    print("KERNEL_OK")
</pallas_src>

<mosaic_0001>
module attributes {stable_mosaic.version = 11 : i64} {
  func.func @_action_head_kernel(%arg0: i32, %arg1: memref<8x32xf32, #tpu.memory_space<vmem>>, %arg2: memref<32x64xf32, #tpu.memory_space<vmem>>, %arg3: memref<1x64xf32, #tpu.memory_space<vmem>>, %arg4: memref<64x16xf32, #tpu.memory_space<vmem>>, %arg5: memref<1x16xf32, #tpu.memory_space<vmem>>, %arg6: memref<8x16xf32, #tpu.memory_space<vmem>>) attributes {dimension_semantics = [#tpu.dimension_semantics<parallel>], iteration_bounds = array<i64: 1>, scalar_prefetch = 0 : i64, scratch_operands = 0 : i64, tpu.core_type = #tpu.core_type<tc>, window_params = [{transform_indices = @transform_0, window_bounds = array<i64: 8, 32>}, {pipeline_mode = #tpu.pipeline_mode<synchronous>, transform_indices = @transform_1, window_bounds = array<i64: 32, 64>}, {pipeline_mode = #tpu.pipeline_mode<synchronous>, transform_indices = @transform_2, window_bounds = array<i64: 1, 64>}, {pipeline_mode = #tpu.pipeline_mode<synchronous>, transform_indices = @transform_3, window_bounds = array<i64: 64, 16>}, {pipeline_mode = #tpu.pipeline_mode<synchronous>, transform_indices = @transform_4, window_bounds = array<i64: 1, 16>}, {transform_indices = @transform_5, window_bounds = array<i64: 8, 16>}]} {
    %c0 = arith.constant 0 : index
    %c0_0 = arith.constant 0 : index
    %0 = vector.load %arg1[%c0, %c0_0] : memref<8x32xf32, #tpu.memory_space<vmem>>, vector<8x32xf32>
    %c0_1 = arith.constant 0 : index
    %c0_2 = arith.constant 0 : index
    %1 = vector.load %arg2[%c0_1, %c0_2] : memref<32x64xf32, #tpu.memory_space<vmem>>, vector<32x64xf32>
    %cst = arith.constant dense<0.000000e+00> : vector<8x64xf32>
    %2 = tpu.matmul %0, %1, %cst {dimension_numbers = #tpu.dot_dimension_numbers<[1], [0], [0], [1], [0, 0, 1, 1], [], []>} : vector<8x32xf32>, vector<32x64xf32>, vector<8x64xf32> -> vector<8x64xf32>
    %c0_3 = arith.constant 0 : index
    %c0_4 = arith.constant 0 : index
    %3 = vector.load %arg3[%c0_3, %c0_4] : memref<1x64xf32, #tpu.memory_space<vmem>>, vector<1x64xf32>
    %4 = vector.broadcast %3 : vector<1x64xf32> to vector<8x64xf32>
    %5 = arith.addf %2, %4 : vector<8x64xf32>
    %cst_5 = arith.constant 5.000000e-01 : f32
    %6 = vector.broadcast %cst_5 : f32 to vector<8x64xf32>
    %7 = arith.mulf %6, %5 : vector<8x64xf32>
    %cst_6 = arith.constant 0.707106769 : f32
    %8 = vector.broadcast %cst_6 : f32 to vector<8x64xf32>
    %9 = arith.mulf %5, %8 : vector<8x64xf32>
    %10 = math.erf %9 : vector<8x64xf32>
    %cst_7 = arith.constant 1.000000e+00 : f32
    %11 = vector.broadcast %cst_7 : f32 to vector<8x64xf32>
    %12 = arith.addf %11, %10 : vector<8x64xf32>
    %13 = arith.mulf %7, %12 : vector<8x64xf32>
    %c0_8 = arith.constant 0 : index
    %c0_9 = arith.constant 0 : index
    %14 = vector.load %arg4[%c0_8, %c0_9] : memref<64x16xf32, #tpu.memory_space<vmem>>, vector<64x16xf32>
    %cst_10 = arith.constant dense<0.000000e+00> : vector<8x16xf32>
    %15 = tpu.matmul %13, %14, %cst_10 {dimension_numbers = #tpu.dot_dimension_numbers<[1], [0], [0], [1], [0, 0, 1, 1], [], []>} : vector<8x64xf32>, vector<64x16xf32>, vector<8x16xf32> -> vector<8x16xf32>
    %c0_11 = arith.constant 0 : index
    %c0_12 = arith.constant 0 : index
    %16 = vector.load %arg5[%c0_11, %c0_12] : memref<1x16xf32, #tpu.memory_space<vmem>>, vector<1x16xf32>
    %17 = vector.broadcast %16 : vector<1x16xf32> to vector<8x16xf32>
    %18 = arith.addf %15, %17 : vector<8x16xf32>
    %c0_13 = arith.constant 0 : index
    %c0_14 = arith.constant 0 : index
    %19 = vector.load %arg6[%c0_13, %c0_14] : memref<8x16xf32, #tpu.memory_space<vmem>>, vector<8x16xf32>
    tpu.vector_store %arg6[%c0_13, %c0_14], %18 {strides = array<i32>} : memref<8x16xf32, #tpu.memory_space<vmem>>, vector<8x16xf32>,
    return
  }
  func.func @transform_0(%arg0: i32) -> (i32, i32) {
    %c0_i32 = arith.constant 0 : i32
    %c0_i32_0 = arith.constant 0 : i32
    return %arg0, %c0_i32 : i32, i32
  }
  func.func @transform_1(%arg0: i32) -> (i32, i32) {
    %c0_i32 = arith.constant 0 : i32
    %c0_i32_0 = arith.constant 0 : i32
    %c0_i32_1 = arith.constant 0 : i32
    return %c0_i32, %c0_i32_0 : i32, i32
  }
  func.func @transform_2(%arg0: i32) -> (i32, i32) {
    %c0_i32 = arith.constant 0 : i32
    %c0_i32_0 = arith.constant 0 : i32
    %c0_i32_1 = arith.constant 0 : i32
    return %c0_i32, %c0_i32_0 : i32, i32
  }
  func.func @transform_3(%arg0: i32) -> (i32, i32) {
    %c0_i32 = arith.constant 0 : i32
    %c0_i32_0 = arith.constant 0 : i32
    %c0_i32_1 = arith.constant 0 : i32
    return %c0_i32, %c0_i32_0 : i32, i32
  }
  func.func @transform_4(%arg0: i32) -> (i32, i32) {
    %c0_i32 = arith.constant 0 : i32
    %c0_i32_0 = arith.constant 0 : i32
    %c0_i32_1 = arith.constant 0 : i32
    return %c0_i32, %c0_i32_0 : i32, i32
  }
  func.func @transform_5(%arg0: i32) -> (i32, i32) {
    %c0_i32 = arith.constant 0 : i32
    %c0_i32_0 = arith.constant 0 : i32
    return %arg0, %c0_i32 : i32, i32
  }
}

</mosaic_0001>

<llo_original>
// kernel: action_head_forward.1
$region0: #{action_head_forward.1}
  #allocation0 [shape = 'u32[]', space=smem, size = 0x4, offset = 0x4, fixed_abs, tag = 'smem constant byte address 0x4 - core index']
  #allocation1 [shape = 'u32[144,128]{1,0:T(1,128)}', space=vmem, size = 0x12000, scoped, tag = 'internal scratch']
  %s0 = inlined_call_operand.vmem [shape: f32[8,32], index: 0, kind: input, shape index: {}]
  %s1 = inlined_call_operand.vmem [shape: f32[32,64], index: 1, kind: input, shape index: {}]
  %s2 = inlined_call_operand.vmem [shape: f32[1,64], index: 2, kind: input, shape index: {}]
  %s3 = inlined_call_operand.vmem [shape: f32[64,16], index: 3, kind: input, shape index: {}]
  %s4 = inlined_call_operand.vmem [shape: f32[1,16], index: 4, kind: input, shape index: {}]
  %s5 = inlined_call_operand.hbm [shape: f32[8,16], index: 5, kind: output, shape index: {}]
  %s6 = sld [smem:[#allocation0]]
  $region30: #{action_head_forward.1} parent=0
    _
  %s8 = ssub.s32 1, %s6
  %s9 = scalar_select 0, %s8, %s6
  $region1: #{action_head_forward.1} parent=0
    #allocation2 [shape = 'u8[4096]{0}', space=vmem, size = 0x1000, scoped, tag = 'output window, operand 0, single buffered']
    #allocation3 [shape = 's32[1]{0}', space=sflag, size = 0x4, scoped, tag = 'scoped memory for action_head_forward.1']
    %10 = vsyncpa [#allocation3], 0
    // Predicated region
    $region2: #{action_head_forward.1} parent=1 // pred_check
      _
    $region3: #{action_head_forward.1} parent=1 // pred_check_branch
      %12 = sbr.rel (0) target = $region5
    $region4: #{action_head_forward.1} parent=1 // pred_region
      _
    $region5: #{action_head_forward.1} parent=1 // pred_fallthru
      _
    // Predicated region
    $region6: #{action_head_forward.1} parent=1 // pred_check
      _
    $region7: #{action_head_forward.1} parent=1 // pred_check_branch
      %14 = sbr.rel (0) target = $region9
    $region8: #{action_head_forward.1} parent=1 // pred_region
      _
    $region9: #{action_head_forward.1} parent=1 // pred_fallthru
      _
    // Predicated region
    $region10: #{action_head_forward.1} parent=1 // pred_check
      _
    $region11: #{action_head_forward.1} parent=1 // pred_check_branch
      %16 = sbr.rel (0) target = $region13
    $region12: #{action_head_forward.1} parent=1 // pred_region
      _
    $region13: #{action_head_forward.1} parent=1 // pred_fallthru
      _
    // Predicated region
    $region14: #{action_head_forward.1} parent=1 // pred_check
      _
    $region15: #{action_head_forward.1} parent=1 // pred_check_branch
      %18 = sbr.rel (0) target = $region17
    $region16: #{action_head_forward.1} parent=1 // pred_region
      _
    $region17: #{action_head_forward.1} parent=1 // pred_fallthru
      _
    // Predicated region
    $region18: #{action_head_forward.1} parent=1 // pred_check
      _
    $region19: #{action_head_forward.1} parent=1 // pred_check_branch
      %20 = sbr.rel (0) target = $region21
    $region20: #{action_head_forward.1} parent=1 // pred_region
      _
    $region21: #{action_head_forward.1} parent=1 // pred_fallthru
      _
    %v21 = vld [vmem:[%s0] sm:$0xff]
    %v22 = vld [vmem:[%s1] sm:$0xff]
    %v23 = vld [vmem:[%s1 + $0x8] sm:$0xff]
    %v24 = vld [vmem:[%s1 + $0x10] sm:$0xff]
    %v25 = vld [vmem:[%s1 + $0x18] sm:$0xff]
    %v26 = vld [vmem:[%s2] sm:$0x1]
    %v28 = vlaneseq
    %v29 = vshrl.u32 %v28, 7
    %v30 = vsub.s32 0, %v29
    %v31 = vrot.slane %v26, %v30
    %vm33 = vcmask 261120
    %v35 = vsel %vm33, %v21, 0
    %37 = vmatprep.subr.mxu0 0.0
    %38 = vmatpush1.msra.mxu0 %v22
    %39 = vmatprep.subr.mxu0 0.0
    %40 = vmatpush1.msra.mxu0 %v23
    %41 = vmatprep.subr.mxu0 0.0
    %42 = vmatpush1.msra.mxu0 %v24
    %43 = vmatprep.subr.mxu0 0.0
    %44 = vmatpush1.msra.mxu0 %v25
    %45 = vmatprep.subr.mxu0 0.0
    %46 = vmatpush1.msra.mxu0 0.0
    %47 = vmatprep.subr.mxu0 0.0
    %48 = vmatpush1.msra.mxu0 0.0
    %49 = vmatprep.subr.mxu0 0.0
    %50 = vmatpush1.msra.mxu0 0.0
    %51 = vmatprep.subr.mxu0 0.0
    %52 = vmatpush1.msra.mxu0 0.0
    %53 = vmatprep.subr.mxu0 0.0
    %54 = vmatpush1.msra.mxu0 0.0
    %55 = vmatprep.subr.mxu0 0.0
    %56 = vmatpush1.msra.mxu0 0.0
    %57 = vmatprep.subr.mxu0 0.0
    %58 = vmatpush1.msra.mxu0 0.0
    %59 = vmatprep.subr.mxu0 0.0
    %60 = vmatpush1.msra.mxu0 0.0
    %61 = vmatprep.subr.mxu0 0.0
    %62 = vmatpush1.msra.mxu0 0.0
    %63 = vmatprep.subr.mxu0 0.0
    %64 = vmatpush1.msra.mxu0 0.0
    %65 = vmatprep.subr.mxu0 0.0
    %66 = vmatpush1.msra.mxu0 0.0
    %67 = vmatprep.subr.mxu0 0.0
    %68 = vmatpush1.msra.mxu0 0.0
    %69 = vmatprep.subr.mxu0 0.0
    %70 = vmatpush1.msra.mxu0 0.0
    %71 = vmatprep.subr.mxu0 0.0
    %72 = vmatpush1.msra.mxu0 0.0
    %73 = vmatprep.subr.mxu0 0.0
    %74 = vmatpush1.msra.mxu0 0.0
    %75 = vmatprep.subr.mxu0 0.0
    %76 = vmatpush1.msra.mxu0 0.0
    %77 = vmatprep.subr.mxu0 0.0
    %78 = vmatpush1.msra.mxu0 0.0
    %79 = vmatprep.subr.mxu0 0.0
    %80 = vmatpush1.msra.mxu0 0.0
    %81 = vmatprep.subr.mxu0 0.0
    %82 = vmatpush1.msra.mxu0 0.0
    %83 = vmatprep.subr.mxu0 0.0
    %84 = vmatpush1.msra.mxu0 0.0
    %85 = vmatprep.subr.mxu0 0.0
    %86 = vmatpush1.msra.mxu0 0.0
    %87 = vmatprep.subr.mxu0 0.0
    %88 = vmatpush1.msra.mxu0 0.0
    %89 = vmatprep.subr.mxu0 0.0
    %90 = vmatpush1.msra.mxu0 0.0
    %91 = vmatprep.subr.mxu0 0.0
    %92 = vmatpush1.msra.mxu0 0.0
    %93 = vmatprep.subr.mxu0 0.0
    %94 = vmatpush1.msra.mxu0 0.0
    %95 = vmatprep.subr.mxu0 0.0
    %96 = vmatpush1.msra.mxu0 0.0
    %97 = vmatprep.subr.mxu0 0.0
    %98 = vmatpush1.msra.mxu0 0.0
    %99 = vmatprep.subr.mxu0 0.0
    %100 = vmatpush1.msra.mxu0 0.0
    %101 = vmatprep.mubr.f32.mxu0 0.0
    %102 = vmatmul.mubr.f32.gmra.mrb[0].mxu0 %v35
    %v103 = vpop.f32.mrb[0].mxu0
    %v104 = vadd.f32 %v31, %v103
    %v105 = vpop.f32.mrb[0].mxu0
    %106 = vdwg.mxu0
    %v107 = vmul.f32 %v104, 0.5
    %v108 = vmul.f32 %v104, 0.70710677
    %v109 = verf.f32.pop %v108
    %v110 = vadd.f32 %v109, 1.0
    %v111 = vmul.f32 %v107, %v110
    %v112 = vld [vmem:[%s3] sm:$0xff]
    %v113 = vld [vmem:[%s3 + $0x8] sm:$0xff]
    %v114 = vld [vmem:[%s3 + $0x10] sm:$0xff]
    %v115 = vld [vmem:[%s3 + $0x18] sm:$0xff]
    %v116 = vld [vmem:[%s3 + $0x20] sm:$0xff]
    %v117 = vld [vmem:[%s3 + $0x28] sm:$0xff]
    %v118 = vld [vmem:[%s3 + $0x30] sm:$0xff]
    %v119 = vld [vmem:[%s3 + $0x38] sm:$0xff]
    %v120 = vld [vmem:[%s4] sm:$0x1]
    %v122 = vlaneseq
    %v123 = vshrl.u32 %v122, 7
    %v124 = vsub.s32 0, %v123
    %v125 = vrot.slane %v120, %v124
    %vm127 = vcmask 523264
    %v129 = vsel %vm127, %v111, 0
    %131 = vmatprep.subr.mxu0 0.0
    %132 = vmatpush1.msra.mxu0 %v112
    %133 = vmatprep.subr.mxu0 0.0
    %134 = vmatpush1.msra.mxu0 %v113
    %135 = vmatprep.subr.mxu0 0.0
    %136 = vmatpush1.msra.mxu0 %v114
    %137 = vmatprep.subr.mxu0 0.0
    %138 = vmatpush1.msra.mxu0 %v115
    %139 = vmatprep.subr.mxu0 0.0
    %140 = vmatpush1.msra.mxu0 %v116
    %141 = vmatprep.subr.mxu0 0.0
    %142 = vmatpush1.msra.mxu0 %v117
    %143 = vmatprep.subr.mxu0 0.0
    %144 = vmatpush1.msra.mxu0 %v118
    %145 = vmatprep.subr.mxu0 0.0
    %146 = vmatpush1.msra.mxu0 %v119
    %147 = vmatprep.subr.mxu0 0.0
    %148 = vmatpush1.msra.mxu0 0.0
    %149 = vmatprep.subr.mxu0 0.0
    %150 = vmatpush1.msra.mxu0 0.0
    %151 = vmatprep.subr.mxu0 0.0
    %152 = vmatpush1.msra.mxu0 0.0
    %153 = vmatprep.subr.mxu0 0.0
    %154 = vmatpush1.msra.mxu0 0.0
    %155 = vmatprep.subr.mxu0 0.0
    %156 = vmatpush1.msra.mxu0 0.0
    %157 = vmatprep.subr.mxu0 0.0
    %158 = vmatpush1.msra.mxu0 0.0
    %159 = vmatprep.subr.mxu0 0.0
    %160 = vmatpush1.msra.mxu0 0.0
    %161 = vmatprep.subr.mxu0 0.0
    %162 = vmatpush1.msra.mxu0 0.0
    %163 = vmatprep.subr.mxu0 0.0
    %164 = vmatpush1.msra.mxu0 0.0
    %165 = vmatprep.subr.mxu0 0.0
    %166 = vmatpush1.msra.mxu0 0.0
    %167 = vmatprep.subr.mxu0 0.0
    %168 = vmatpush1.msra.mxu0 0.0
    %169 = vmatprep.subr.mxu0 0.0
    %170 = vmatpush1.msra.mxu0 0.0
    %171 = vmatprep.subr.mxu0 0.0
    %172 = vmatpush1.msra.mxu0 0.0
    %173 = vmatprep.subr.mxu0 0.0
    %174 = vmatpush1.msra.mxu0 0.0
    %175 = vmatprep.subr.mxu0 0.0
    %176 = vmatpush1.msra.mxu0 0.0
    %177 = vmatprep.subr.mxu0 0.0
    %178 = vmatpush1.msra.mxu0 0.0
    %179 = vmatprep.subr.mxu0 0.0
    %180 = vmatpush1.msra.mxu0 0.0
    %181 = vmatprep.subr.mxu0 0.0
    %182 = vmatpush1.msra.mxu0 0.0
    %183 = vmatprep.subr.mxu0 0.0
    %184 = vmatpush1.msra.mxu0 0.0
    %185 = vmatprep.subr.mxu0 0.0
    %186 = vmatpush1.msra.mxu0 0.0
    %187 = vmatprep.subr.mxu0 0.0
    %188 = vmatpush1.msra.mxu0 0.0
    %189 = vmatprep.subr.mxu0 0.0
    %190 = vmatpush1.msra.mxu0 0.0
    %191 = vmatprep.subr.mxu0 0.0
    %192 = vmatpush1.msra.mxu0 0.0
    %193 = vmatprep.subr.mxu0 0.0
    %194 = vmatpush1.msra.mxu0 0.0
    %195 = vmatprep.mubr.f32.mxu0 0.0
    %196 = vmatmul.mubr.f32.gmra.mrb[0].mxu0 %v129
    %v197 = vpop.f32.mrb[0].mxu0
    %v198 = vadd.f32 %v125, %v197
    %v199 = vpop.f32.mrb[0].mxu0
    %200 = vdwg.mxu0
    %vm201 = vcmask 130048
    %202 = vst.msk [vmem:[#allocation2] sm:$0xff] %vm201, %v198
    // Predicated region
    $region22: #{action_head_forward.1} parent=1 // pred_check
      _
    $region23: #{action_head_forward.1} parent=1 // pred_check_branch
      %204 = sbr.rel (0) target = $region25
    $region24: #{action_head_forward.1} parent=1 // pred_region
      %s206 = ssub.s32 128, 128
      %207 = vsyncadd [#allocation3], %s206
      %s209 = sshll.u32 [#allocation2], 4
      %s210 = int_to_ptr.vmem [resolvable:$true] %s209
      %212 = dma.vmem_to_hbm [thread:$0]  %s210, 128, %s5, [#allocation3]
    $region25: #{action_head_forward.1} parent=1 // pred_fallthru
      _
    // Predicated region
    $region26: #{action_head_forward.1} parent=1 // pred_check
      _
    $region27: #{action_head_forward.1} parent=1 // pred_check_branch
      %214 = sbr.rel (0) target = $region29
    $region28: #{action_head_forward.1} parent=1 // pred_region
      %215 = dma.done [#allocation3], 128
    $region29: #{action_head_forward.1} parent=1 // pred_fallthru
      _
    %216 = vsyncpa [#allocation3], 1

</llo_original>
